<compile_context>
chip_gen: v6e
topology: v6e:2x2x1
jax: 0.10.0
libtpu: 0.0.40
codegen_flags: <defaults>
</compile_context>

<pallas_src>
import functools
import math

import jax
import jax.numpy as jnp
from jax import lax
from jax.experimental import pallas as pl
from jax.experimental.pallas import tpu as pltpu


def _round_up(x, m):
    return ((x + m - 1) // m) * m


def _all_fc_kernel(x_ref, w1_ref, b1_ref, wh_ref, bh_ref, wf_ref, bf_ref,
                   out_ref, *, num_hidden):
    # layer1: Linear (bf16 MXU inputs, f32 accumulate) + bias + ReLU.
    # Dropout = identity in eval mode.
    h = jnp.dot(x_ref[...].astype(jnp.bfloat16), w1_ref[...],
                preferred_element_type=jnp.float32)
    h = jnp.maximum(h + b1_ref[...], 0.0)

    # Hidden stack: Linear + ReLU.  The eval-mode BN affine that follows each
    # ReLU in the module is pre-folded into the NEXT layer's weights/bias
    # (exact), so the kernel body stays a plain Linear+ReLU chain.
    def hidden_step(h, w_bf16, b_f32):
        hh = jnp.dot(h.astype(jnp.bfloat16), w_bf16,
                     preferred_element_type=jnp.float32)
        return jnp.maximum(hh + b_f32, 0.0)

    if num_hidden > 8:
        # Large stacks: fori_loop keeps vreg pressure flat.
        def body(i, h):
            return hidden_step(h, wh_ref[i], bh_ref[i])
        h = lax.fori_loop(0, num_hidden, body, h)
    else:
        for i in range(num_hidden):
            h = hidden_step(h, wh_ref[i], bh_ref[i])

    # Final fc.  Output columns are zero-padded to a multiple of 128 so this
    # store is lane-dense (unmasked vst).
    o = jnp.dot(h.astype(jnp.bfloat16), wf_ref[...],
                preferred_element_type=jnp.float32)
    out_ref[...] = (o + bf_ref[...]).astype(out_ref.dtype)


def all_fc_forward(inp, kparams, *, input_flat, num_layers, out_dim,
                   row_tile=256):
    """inp: any shape whose total size is a multiple of input_dim*length."""
    x = inp.reshape(-1, input_flat).astype(jnp.float32)
    n = x.shape[0]
    w1, b1, wh, bh, wf, bf = kparams
    hidden_dim = w1.shape[1]
    out_pad = wf.shape[1]
    num_hidden = num_layers - 1
    num_h_slots = wh.shape[0]

    # Row tiling: pad the flattened batch to a multiple of the row tile so the
    # grid covers it exactly.  Tiny batches shrink the tile instead of padding up.
    row_tile = max(8, min(row_tile, _round_up(n, 8)))
    n_pad = _round_up(n, row_tile)
    if n_pad != n:
        x = jnp.concatenate(
            [x, jnp.zeros((n_pad - n, input_flat), x.dtype)], axis=0)
    grid = (n_pad // row_tile,)

    kernel = functools.partial(_all_fc_kernel, num_hidden=num_hidden)

    out_padded = pl.pallas_call(
        kernel,
        out_shape=jax.ShapeDtypeStruct((n_pad, out_pad), jnp.float32),
        grid_spec=pltpu.PrefetchScalarGridSpec(
            num_scalar_prefetch=0,
            grid=grid,
            in_specs=[
                # activations: tiled over rows
                pl.BlockSpec((row_tile, input_flat), lambda i: (i, 0)),
                # weights / biases: constant index_map -> resident in VMEM
                pl.BlockSpec((input_flat, hidden_dim), lambda i: (0, 0)),
                pl.BlockSpec((1, hidden_dim), lambda i: (0, 0)),
                pl.BlockSpec((num_h_slots, hidden_dim, hidden_dim),
                             lambda i: (0, 0, 0)),
                pl.BlockSpec((num_h_slots, 1, hidden_dim),
                             lambda i: (0, 0, 0)),
                pl.BlockSpec((hidden_dim, out_pad), lambda i: (0, 0)),
                pl.BlockSpec((1, out_pad), lambda i: (0, 0)),
            ],
            out_specs=pl.BlockSpec((row_tile, out_pad), lambda i: (i, 0)),
        ),
        compiler_params=pltpu.CompilerParams(
            # Batch rows are independent -> megacore shards them on v7x.
            dimension_semantics=("parallel",),
            # Cap below v7x's 64 MiB physical VMEM; above default scoped limit.
            vmem_limit_bytes=48 << 20,
        ),
    )(x, w1, b1, wh, bh, wf, bf)

    return out_padded[:n, :out_dim]


# --------------------------------------------------------------------------
# Parameter construction (mirrors the PyTorch module's init) and kernel-side
# folding (BN-into-next-layer fold, bf16 cast, lane padding).
# --------------------------------------------------------------------------

def xavier_uniform(key, fan_in, fan_out):
    bound = math.sqrt(6.0 / (fan_in + fan_out))
    return jax.random.uniform(key, (fan_in, fan_out), jnp.float32, -bound, bound)


def init_all_fc_params(key, input_flat, hidden_dim, output_dim, num_layers):
    """Raw f32 params mirroring the PyTorch module (eval-mode BN buffers).

    Weights are stored (in_features, out_features) so the kernel computes
    y = x @ W + b directly (xavier_uniform is symmetric in fan_in/fan_out, so
    this matches PyTorch's (out, in) init statistically; a real PyTorch
    checkpoint would need a transpose).
    """
    num_hidden = num_layers - 1
    nslots = max(num_hidden, 1)
    keys = jax.random.split(key, 6 + nslots)

    w1 = xavier_uniform(keys[0], input_flat, hidden_dim)
    b1 = jnp.zeros((1, hidden_dim), jnp.float32)

    if num_hidden > 0:
        wh = jnp.stack([xavier_uniform(keys[6 + i], hidden_dim, hidden_dim)
                        for i in range(num_hidden)], axis=0)
    else:
        wh = jnp.zeros((1, hidden_dim, hidden_dim), jnp.float32)  # placeholder
    bh = jnp.zeros((nslots, 1, hidden_dim), jnp.float32)

    # BatchNorm1d eval-mode buffers.  Non-trivial values (as if trained) so the
    # BN fold is actually exercised; fresh-module defaults would be
    # gamma=1, beta=0, running_mean=0, running_var=1.
    gamma = 1.0 + 0.2 * jax.random.normal(keys[2], (nslots, 1, hidden_dim),
                                          jnp.float32)
    beta = 0.1 * jax.random.normal(keys[3], (nslots, 1, hidden_dim), jnp.float32)
    running_mean = 0.1 * jax.random.normal(keys[4], (nslots, 1, hidden_dim),
                                           jnp.float32)
    running_var = 0.8 + 0.4 * jax.random.uniform(keys[5], (nslots, 1, hidden_dim),
                                                 jnp.float32)

    wf = xavier_uniform(keys[1], hidden_dim, output_dim)
    bf = jnp.zeros((1, output_dim), jnp.float32)

    return (w1, b1, wh, bh, gamma, beta, running_mean, running_var, wf, bf)


def fold_params_for_kernel(params, *, num_layers, eps=1e-5):
    """Fold each eval-mode BN (which sits AFTER the ReLU of hidden block i)
    into the input side of the NEXT linear (hidden block i+1, or the final fc).
    This is exact for arbitrary BN buffers.  Then cast weights to bf16 and
    zero-pad the final layer's output columns to a lane-dense multiple of 128."""
    (w1, b1, wh, bh, gamma, beta, running_mean, running_var, wf, bf) = params
    num_hidden = num_layers - 1
    hidden_dim, out_dim = wf.shape

    scale = gamma / jnp.sqrt(running_var + eps)       # (L, 1, H)
    shift = beta - running_mean * scale               # (L, 1, H)

    if num_hidden > 0:
        wh_list = [wh[0]]
        bh_list = [bh[0]]
        for i in range(1, num_hidden):
            s = scale[i - 1].reshape(hidden_dim, 1)   # scale input rows
            wh_list.append(s * wh[i])
            bh_list.append(bh[i] + shift[i - 1] @ wh[i])
        wh_k = jnp.stack(wh_list, axis=0)
        bh_k = jnp.stack(bh_list, axis=0)
        wf_k = scale[num_hidden - 1].reshape(hidden_dim, 1) * wf
        bf_k = bf + shift[num_hidden - 1] @ wf
    else:
        wh_k = jnp.zeros((1, hidden_dim, hidden_dim), jnp.float32)  # placeholder
        bh_k = jnp.zeros((1, 1, hidden_dim), jnp.float32)
        wf_k, bf_k = wf, bf

    out_pad = _round_up(out_dim, 128)
    wf_p = jnp.zeros((hidden_dim, out_pad), jnp.float32).at[:, :out_dim].set(wf_k)
    bf_p = jnp.zeros((1, out_pad), jnp.float32).at[:, :out_dim].set(bf_k)

    return (w1.astype(jnp.bfloat16), b1,
            wh_k.astype(jnp.bfloat16), bh_k,
            wf_p.astype(jnp.bfloat16), bf_p)


# --------------------------------------------------------------------------
# Plain-JAX references for sanity checking.
# --------------------------------------------------------------------------

def all_fc_reference(inp, params, *, input_flat, num_layers, eps=1e-5):
    """Eval-mode forward with raw f32 params (matches the PyTorch math:
    Linear -> ReLU -> BN(running stats) -> Dropout(identity))."""
    x = inp.reshape(-1, input_flat).astype(jnp.float32)
    (w1, b1, wh, bh, gamma, beta, running_mean, running_var, wf, bf) = params
    h = jnp.maximum(x @ w1 + b1, 0.0)
    for i in range(num_layers - 1):
        h = jnp.maximum(h @ wh[i] + bh[i], 0.0)
        h = (h - running_mean[i]) / jnp.sqrt(running_var[i] + eps) * gamma[i] + beta[i]
    return h @ wf + bf


def all_fc_reference_folded(inp, kparams, *, input_flat, num_layers, out_dim):
    """Same folded bf16/f32 mixed-precision path as the kernel, in plain JAX."""
    x = inp.reshape(-1, input_flat).astype(jnp.float32)
    w1, b1, wh, bh, wf, bf = kparams
    h = jnp.dot(x.astype(jnp.bfloat16), w1, preferred_element_type=jnp.float32)
    h = jnp.maximum(h + b1, 0.0)
    for i in range(num_layers - 1):
        h = jnp.dot(h.astype(jnp.bfloat16), wh[i],
                    preferred_element_type=jnp.float32)
        h = jnp.maximum(h + bh[i], 0.0)
    o = jnp.dot(h.astype(jnp.bfloat16), wf, preferred_element_type=jnp.float32)
    return (o + bf)[:, :out_dim]


if __name__ == "__main__":
    # Small configuration consistent with the module's __init__.
    input_dim, length = 4, 8           # self.input = input_dim * length = 32
    hidden_dim = 32
    output_dim = 8
    num_layers = 3                     # layer1 + 2 hidden blocks + fc
    batch = 8

    input_flat = input_dim * length

    key = jax.random.PRNGKey(0)
    k_x, k_p = jax.random.split(key)

    # Module forward does inp.view(-1, input_dim*length); feed (batch, length, input_dim).
    inp = jax.random.normal(k_x, (batch, length, input_dim), jnp.float32)

    raw_params = init_all_fc_params(k_p, input_flat, hidden_dim, output_dim,
                                    num_layers)
    kparams = fold_params_for_kernel(raw_params, num_layers=num_layers)

    out = all_fc_forward(inp, kparams, input_flat=input_flat,
                         num_layers=num_layers, out_dim=output_dim)
    out = jax.block_until_ready(out)
    assert out.shape == (batch, output_dim)

    # Tight check vs. the identical folded mixed-precision math in plain JAX.
    ref_folded = all_fc_reference_folded(inp, kparams, input_flat=input_flat,
                                         num_layers=num_layers,
                                         out_dim=output_dim)
    assert jnp.allclose(out, ref_folded, atol=1e-3, rtol=1e-3), \
        float(jnp.max(jnp.abs(out - ref_folded)))

    # Loose check vs. the full-f32 eval-mode reference (bf16 weight rounding).
    ref_f32 = all_fc_reference(inp, raw_params, input_flat=input_flat,
                               num_layers=num_layers)
    assert jnp.allclose(out, ref_f32, atol=5e-2, rtol=5e-2), \
        float(jnp.max(jnp.abs(out - ref_f32)))

    print("KERNEL_OK")
</pallas_src>

<mosaic_0001>
module attributes {stable_mosaic.version = 11 : i64} {
  func.func @_all_fc_kernel(%arg0: i32, %arg1: memref<8x32xf32, #tpu.memory_space<vmem>>, %arg2: memref<32x32xbf16, #tpu.memory_space<vmem>>, %arg3: memref<1x32xf32, #tpu.memory_space<vmem>>, %arg4: memref<2x32x32xbf16, #tpu.memory_space<vmem>>, %arg5: memref<2x1x32xf32, #tpu.memory_space<vmem>>, %arg6: memref<32x128xbf16, #tpu.memory_space<vmem>>, %arg7: memref<1x128xf32, #tpu.memory_space<vmem>>, %arg8: memref<8x128xf32, #tpu.memory_space<vmem>>) attributes {dimension_semantics = [#tpu.dimension_semantics<parallel>], iteration_bounds = array<i64: 1>, scalar_prefetch = 0 : i64, scratch_operands = 0 : i64, tpu.core_type = #tpu.core_type<tc>, window_params = [{transform_indices = @transform_0, window_bounds = array<i64: 8, 32>}, {pipeline_mode = #tpu.pipeline_mode<synchronous>, transform_indices = @transform_1, window_bounds = array<i64: 32, 32>}, {pipeline_mode = #tpu.pipeline_mode<synchronous>, transform_indices = @transform_2, window_bounds = array<i64: 1, 32>}, {pipeline_mode = #tpu.pipeline_mode<synchronous>, transform_indices = @transform_3, window_bounds = array<i64: 2, 32, 32>}, {pipeline_mode = #tpu.pipeline_mode<synchronous>, transform_indices = @transform_4, window_bounds = array<i64: 2, 1, 32>}, {pipeline_mode = #tpu.pipeline_mode<synchronous>, transform_indices = @transform_5, window_bounds = array<i64: 32, 128>}, {pipeline_mode = #tpu.pipeline_mode<synchronous>, transform_indices = @transform_6, window_bounds = array<i64: 1, 128>}, {transform_indices = @transform_7, window_bounds = array<i64: 8, 128>}]} {
    %c0 = arith.constant 0 : index
    %c0_0 = arith.constant 0 : index
    %0 = vector.load %arg1[%c0, %c0_0] : memref<8x32xf32, #tpu.memory_space<vmem>>, vector<8x32xf32>
    %1 = arith.truncf %0 : vector<8x32xf32> to vector<8x32xbf16>
    %c0_1 = arith.constant 0 : index
    %c0_2 = arith.constant 0 : index
    %2 = vector.load %arg2[%c0_1, %c0_2] : memref<32x32xbf16, #tpu.memory_space<vmem>>, vector<32x32xbf16>
    %cst = arith.constant dense<0.000000e+00> : vector<8x32xf32>
    %3 = tpu.matmul %1, %2, %cst {dimension_numbers = #tpu.dot_dimension_numbers<[1], [0], [0], [1], [0, 0, 1, 1], [], []>} : vector<8x32xbf16>, vector<32x32xbf16>, vector<8x32xf32> -> vector<8x32xf32>
    %c0_3 = arith.constant 0 : index
    %c0_4 = arith.constant 0 : index
    %4 = vector.load %arg3[%c0_3, %c0_4] : memref<1x32xf32, #tpu.memory_space<vmem>>, vector<1x32xf32>
    %5 = vector.broadcast %4 : vector<1x32xf32> to vector<8x32xf32>
    %6 = arith.addf %3, %5 : vector<8x32xf32>
    %cst_5 = arith.constant 0.000000e+00 : f32
    %7 = vector.broadcast %cst_5 : f32 to vector<8x32xf32>
    %8 = arith.maximumf %6, %7 : vector<8x32xf32>
    %c0_6 = arith.constant 0 : index
    %c0_7 = arith.constant 0 : index
    %c0_8 = arith.constant 0 : index
    %9 = vector.load %arg4[%c0_6, %c0_7, %c0_8] : memref<2x32x32xbf16, #tpu.memory_space<vmem>>, vector<1x32x32xbf16>
    %10 = vector.shape_cast %9 : vector<1x32x32xbf16> to vector<32x32xbf16>
    %c0_9 = arith.constant 0 : index
    %c0_10 = arith.constant 0 : index
    %c0_11 = arith.constant 0 : index
    %11 = vector.load %arg5[%c0_9, %c0_10, %c0_11] : memref<2x1x32xf32, #tpu.memory_space<vmem>>, vector<1x1x32xf32>
    %12 = vector.shape_cast %11 : vector<1x1x32xf32> to vector<1x32xf32>
    %13 = arith.truncf %8 : vector<8x32xf32> to vector<8x32xbf16>
    %cst_12 = arith.constant dense<0.000000e+00> : vector<8x32xf32>
    %14 = tpu.matmul %13, %10, %cst_12 {dimension_numbers = #tpu.dot_dimension_numbers<[1], [0], [0], [1], [0, 0, 1, 1], [], []>} : vector<8x32xbf16>, vector<32x32xbf16>, vector<8x32xf32> -> vector<8x32xf32>
    %15 = vector.broadcast %12 : vector<1x32xf32> to vector<8x32xf32>
    %16 = arith.addf %14, %15 : vector<8x32xf32>
    %cst_13 = arith.constant 0.000000e+00 : f32
    %17 = vector.broadcast %cst_13 : f32 to vector<8x32xf32>
    %18 = arith.maximumf %16, %17 : vector<8x32xf32>
    %c1 = arith.constant 1 : index
    %c0_14 = arith.constant 0 : index
    %c0_15 = arith.constant 0 : index
    %19 = vector.load %arg4[%c1, %c0_14, %c0_15] : memref<2x32x32xbf16, #tpu.memory_space<vmem>>, vector<1x32x32xbf16>
    %20 = vector.shape_cast %19 : vector<1x32x32xbf16> to vector<32x32xbf16>
    %c1_16 = arith.constant 1 : index
    %c0_17 = arith.constant 0 : index
    %c0_18 = arith.constant 0 : index
    %21 = vector.load %arg5[%c1_16, %c0_17, %c0_18] : memref<2x1x32xf32, #tpu.memory_space<vmem>>, vector<1x1x32xf32>
    %22 = vector.shape_cast %21 : vector<1x1x32xf32> to vector<1x32xf32>
    %23 = arith.truncf %18 : vector<8x32xf32> to vector<8x32xbf16>
    %cst_19 = arith.constant dense<0.000000e+00> : vector<8x32xf32>
    %24 = tpu.matmul %23, %20, %cst_19 {dimension_numbers = #tpu.dot_dimension_numbers<[1], [0], [0], [1], [0, 0, 1, 1], [], []>} : vector<8x32xbf16>, vector<32x32xbf16>, vector<8x32xf32> -> vector<8x32xf32>
    %25 = vector.broadcast %22 : vector<1x32xf32> to vector<8x32xf32>
    %26 = arith.addf %24, %25 : vector<8x32xf32>
    %cst_20 = arith.constant 0.000000e+00 : f32
    %27 = vector.broadcast %cst_20 : f32 to vector<8x32xf32>
    %28 = arith.maximumf %26, %27 : vector<8x32xf32>
    %29 = arith.truncf %28 : vector<8x32xf32> to vector<8x32xbf16>
    %c0_21 = arith.constant 0 : index
    %c0_22 = arith.constant 0 : index
    %30 = vector.load %arg6[%c0_21, %c0_22] : memref<32x128xbf16, #tpu.memory_space<vmem>>, vector<32x128xbf16>
    %cst_23 = arith.constant dense<0.000000e+00> : vector<8x128xf32>
    %31 = tpu.matmul %29, %30, %cst_23 {dimension_numbers = #tpu.dot_dimension_numbers<[1], [0], [0], [1], [0, 0, 1, 1], [], []>} : vector<8x32xbf16>, vector<32x128xbf16>, vector<8x128xf32> -> vector<8x128xf32>
    %c0_24 = arith.constant 0 : index
    %c0_25 = arith.constant 0 : index
    %32 = vector.load %arg7[%c0_24, %c0_25] : memref<1x128xf32, #tpu.memory_space<vmem>>, vector<1x128xf32>
    %33 = vector.broadcast %32 : vector<1x128xf32> to vector<8x128xf32>
    %34 = arith.addf %31, %33 : vector<8x128xf32>
    %c0_26 = arith.constant 0 : index
    %c0_27 = arith.constant 0 : index
    %35 = vector.load %arg8[%c0_26, %c0_27] : memref<8x128xf32, #tpu.memory_space<vmem>>, vector<8x128xf32>
    tpu.vector_store %arg8[%c0_26, %c0_27], %34 {strides = array<i32>} : memref<8x128xf32, #tpu.memory_space<vmem>>, vector<8x128xf32>,
    return
  }
  func.func @transform_0(%arg0: i32) -> (i32, i32) {
    %c0_i32 = arith.constant 0 : i32
    %c0_i32_0 = arith.constant 0 : i32
    return %arg0, %c0_i32 : i32, i32
  }
  func.func @transform_1(%arg0: i32) -> (i32, i32) {
    %c0_i32 = arith.constant 0 : i32
    %c0_i32_0 = arith.constant 0 : i32
    %c0_i32_1 = arith.constant 0 : i32
    return %c0_i32, %c0_i32_0 : i32, i32
  }
  func.func @transform_2(%arg0: i32) -> (i32, i32) {
    %c0_i32 = arith.constant 0 : i32
    %c0_i32_0 = arith.constant 0 : i32
    %c0_i32_1 = arith.constant 0 : i32
    return %c0_i32, %c0_i32_0 : i32, i32
  }
  func.func @transform_3(%arg0: i32) -> (i32, i32, i32) {
    %c0_i32 = arith.constant 0 : i32
    %c0_i32_0 = arith.constant 0 : i32
    %c0_i32_1 = arith.constant 0 : i32
    %c0_i32_2 = arith.constant 0 : i32
    return %c0_i32, %c0_i32_0, %c0_i32_1 : i32, i32, i32
  }
  func.func @transform_4(%arg0: i32) -> (i32, i32, i32) {
    %c0_i32 = arith.constant 0 : i32
    %c0_i32_0 = arith.constant 0 : i32
    %c0_i32_1 = arith.constant 0 : i32
    %c0_i32_2 = arith.constant 0 : i32
    return %c0_i32, %c0_i32_0, %c0_i32_1 : i32, i32, i32
  }
  func.func @transform_5(%arg0: i32) -> (i32, i32) {
    %c0_i32 = arith.constant 0 : i32
    %c0_i32_0 = arith.constant 0 : i32
    %c0_i32_1 = arith.constant 0 : i32
    return %c0_i32, %c0_i32_0 : i32, i32
  }
  func.func @transform_6(%arg0: i32) -> (i32, i32) {
    %c0_i32 = arith.constant 0 : i32
    %c0_i32_0 = arith.constant 0 : i32
    %c0_i32_1 = arith.constant 0 : i32
    return %c0_i32, %c0_i32_0 : i32, i32
  }
  func.func @transform_7(%arg0: i32) -> (i32, i32) {
    %c0_i32 = arith.constant 0 : i32
    %c0_i32_0 = arith.constant 0 : i32
    return %arg0, %c0_i32 : i32, i32
  }
}

</mosaic_0001>

<llo_original>
// kernel: tpu_custom_call.1
$region0: #{tpu_custom_call.1}
  #allocation0 [shape = 'u32[]', space=smem, size = 0x4, offset = 0x4, fixed_abs, tag = 'smem constant byte address 0x4 - core index']
  #allocation1 [shape = 'u32[144,128]{1,0:T(1,128)}', space=vmem, size = 0x12000, scoped, tag = 'internal scratch']
  %s0 = inlined_call_operand.hbm [shape: f32[8,32], index: 0, kind: input, shape index: {}]
  %s1 = inlined_call_operand.hbm [shape: bf16[32,32], index: 1, kind: input, shape index: {}]
  %s2 = inlined_call_operand.vmem [shape: f32[1,32], index: 2, kind: input, shape index: {}]
  %s3 = inlined_call_operand.hbm [shape: bf16[2,32,32], index: 3, kind: input, shape index: {}]
  %s4 = inlined_call_operand.vmem [shape: f32[2,1,32], index: 4, kind: input, shape index: {}]
  %s5 = inlined_call_operand.hbm [shape: bf16[32,128], index: 5, kind: input, shape index: {}]
  %s6 = inlined_call_operand.vmem [shape: f32[1,128], index: 6, kind: input, shape index: {}]
  %s7 = inlined_call_operand.hbm [shape: f32[8,128], index: 7, kind: output, shape index: {}]
  %s8 = sld [smem:[#allocation0]]
  $region54: #{tpu_custom_call.1} parent=0
    _
  %s10 = ssub.s32 1, %s8
  %s11 = scalar_select 0, %s10, %s8
  $region1: #{tpu_custom_call.1} parent=0
    #allocation2 [shape = 'u8[4096]{0}', space=vmem, size = 0x1000, scoped, tag = 'input window, operand 0, single buffered']
    #allocation3 [shape = 's32[1]{0}', space=sflag, size = 0x4, scoped, tag = 'scoped memory for tpu_custom_call.1']
    #allocation4 [shape = 's32[1]{0}', space=sflag, size = 0x4, scoped, tag = 'scoped memory for tpu_custom_call.1']
    #allocation5 [shape = 'u8[8192]{0}', space=vmem, size = 0x2000, scoped, tag = 'input window, operand 1, single buffered']
    #allocation6 [shape = 's32[1]{0}', space=sflag, size = 0x4, scoped, tag = 'scoped memory for tpu_custom_call.1']
    #allocation7 [shape = 'u8[16384]{0}', space=vmem, size = 0x4000, scoped, tag = 'input window, operand 3, single buffered']
    #allocation8 [shape = 'u8[8192]{0}', space=vmem, size = 0x2000, scoped, tag = 'input window, operand 5, single buffered']
    #allocation9 [shape = 's32[1]{0}', space=sflag, size = 0x4, scoped, tag = 'scoped memory for tpu_custom_call.1']
    #allocation10 [shape = 'u8[4096]{0}', space=vmem, size = 0x1000, scoped, tag = 'output window, operand 0, single buffered']
    %12 = vsyncpa [#allocation3], 0
    %13 = vsyncpa [#allocation6], 0
    %14 = vsyncpa [#allocation9], 0
    %15 = vsyncpa [#allocation4], 0
    // Predicated region
    $region2: #{tpu_custom_call.1} parent=1 // pred_check
      _
    $region3: #{tpu_custom_call.1} parent=1 // pred_check_branch
      %17 = sbr.rel (0) target = $region5
    $region4: #{tpu_custom_call.1} parent=1 // pred_region
      %s19 = ssub.s32 128, 128
      %20 = vsyncadd [#allocation3], %s19
      %s22 = sshll.u32 [#allocation2], 4
      %s23 = int_to_ptr.vmem [resolvable:$true] %s22
      %25 = dma.hbm_to_vmem [thread:$0]  %s0, 128, %s23, [#allocation3]
    $region5: #{tpu_custom_call.1} parent=1 // pred_fallthru
      _
    // Predicated region
    $region6: #{tpu_custom_call.1} parent=1 // pred_check
      _
    $region7: #{tpu_custom_call.1} parent=1 // pred_check_branch
      %27 = sbr.rel (0) target = $region9
    $region8: #{tpu_custom_call.1} parent=1 // pred_region
      %s29 = ssub.s32 256, 256
      %30 = vsyncadd [#allocation6], %s29
      %s31 = sshll.u32 [#allocation5], 4
      %s32 = int_to_ptr.vmem [resolvable:$true] %s31
      %37 = dma.hbm_to_vmem [thread:$0]  %s1, 256, %s32, [#allocation6], 64, 64, 4
    $region9: #{tpu_custom_call.1} parent=1 // pred_fallthru
      _
    // Predicated region
    $region10: #{tpu_custom_call.1} parent=1 // pred_check
      _
    $region11: #{tpu_custom_call.1} parent=1 // pred_check_branch
      %39 = sbr.rel (0) target = $region13
    $region12: #{tpu_custom_call.1} parent=1 // pred_region
      _
    $region13: #{tpu_custom_call.1} parent=1 // pred_fallthru
      _
    // Predicated region
    $region14: #{tpu_custom_call.1} parent=1 // pred_check
      _
    $region15: #{tpu_custom_call.1} parent=1 // pred_check_branch
      %41 = sbr.rel (0) target = $region17
    $region16: #{tpu_custom_call.1} parent=1 // pred_region
      %s43 = ssub.s32 512, 512
      %44 = vsyncadd [#allocation6], %s43
      %s45 = sshll.u32 [#allocation7], 4
      %s46 = int_to_ptr.vmem [resolvable:$true] %s45
      %51 = dma.hbm_to_vmem [thread:$0]  %s3, 512, %s46, [#allocation6], 64, 64, 4
    $region17: #{tpu_custom_call.1} parent=1 // pred_fallthru
      _
    // Predicated region
    $region18: #{tpu_custom_call.1} parent=1 // pred_check
      _
    $region19: #{tpu_custom_call.1} parent=1 // pred_check_branch
      %53 = sbr.rel (0) target = $region21
    $region20: #{tpu_custom_call.1} parent=1 // pred_region
      _
    $region21: #{tpu_custom_call.1} parent=1 // pred_fallthru
      _
    // Predicated region
    $region22: #{tpu_custom_call.1} parent=1 // pred_check
      _
    $region23: #{tpu_custom_call.1} parent=1 // pred_check_branch
      %55 = sbr.rel (0) target = $region25
    $region24: #{tpu_custom_call.1} parent=1 // pred_region
      %s57 = ssub.s32 256, 256
      %58 = vsyncadd [#allocation9], %s57
      %s59 = sshll.u32 [#allocation8], 4
      %s60 = int_to_ptr.vmem [resolvable:$true] %s59
      %65 = dma.hbm_to_vmem [thread:$0]  %s5, 256, %s60, [#allocation9], 64, 64, 4
    $region25: #{tpu_custom_call.1} parent=1 // pred_fallthru
      _
    // Predicated region
    $region26: #{tpu_custom_call.1} parent=1 // pred_check
      _
    $region27: #{tpu_custom_call.1} parent=1 // pred_check_branch
      %67 = sbr.rel (0) target = $region29
    $region28: #{tpu_custom_call.1} parent=1 // pred_region
      _
    $region29: #{tpu_custom_call.1} parent=1 // pred_fallthru
      _
    // Predicated region
    $region30: #{tpu_custom_call.1} parent=1 // pred_check
      _
    $region31: #{tpu_custom_call.1} parent=1 // pred_check_branch
      %69 = sbr.rel (0) target = $region33
    $region32: #{tpu_custom_call.1} parent=1 // pred_region
      %70 = dma.done [#allocation3], 128
    $region33: #{tpu_custom_call.1} parent=1 // pred_fallthru
      _
    // Predicated region
    $region34: #{tpu_custom_call.1} parent=1 // pred_check
      _
    $region35: #{tpu_custom_call.1} parent=1 // pred_check_branch
      %72 = sbr.rel (0) target = $region37
    $region36: #{tpu_custom_call.1} parent=1 // pred_region
      %73 = dma.done [#allocation6], 256
    $region37: #{tpu_custom_call.1} parent=1 // pred_fallthru
      _
    // Predicated region
    $region38: #{tpu_custom_call.1} parent=1 // pred_check
      _
    $region39: #{tpu_custom_call.1} parent=1 // pred_check_branch
      %75 = sbr.rel (0) target = $region41
    $region40: #{tpu_custom_call.1} parent=1 // pred_region
      %76 = dma.done [#allocation6], 512
    $region41: #{tpu_custom_call.1} parent=1 // pred_fallthru
      _
    // Predicated region
    $region42: #{tpu_custom_call.1} parent=1 // pred_check
      _
    $region43: #{tpu_custom_call.1} parent=1 // pred_check_branch
      %78 = sbr.rel (0) target = $region45
    $region44: #{tpu_custom_call.1} parent=1 // pred_region
      %79 = dma.done [#allocation9], 256
    $region45: #{tpu_custom_call.1} parent=1 // pred_fallthru
      _
    %v81 = vld [vmem:[#allocation2] sm:$0xff]
    %v82 = vpack.c.bf16 %v81, %v81
    %v83 = vld [vmem:[#allocation5] sm:$0xf]
    %v84 = vld [vmem:[#allocation5 + $0x4] sm:$0xf]
    %v85 = vld [vmem:[#allocation5 + $0x8] sm:$0xf]
    %v86 = vld [vmem:[#allocation5 + $0xc] sm:$0xf]
    %v87 = vld [vmem:[%s2] sm:$0x1]
    %v89 = vlaneseq
    %v90 = vshrl.u32 %v89, 7
    %v91 = vsub.s32 0, %v90
    %v92 = vrot.slane %v87, %v91
    %v98 = vunpack.c.l.b16 %v83
    %v99 = vunpack.c.l.b16 %v84
    %v100 = vunpack.c.l.b16 %v85
    %v101 = vunpack.c.l.b16 %v86
    %v102 = vpack.c.b16 %v99, %v98
    %v103 = vpack.c.b16 %v101, %v100
    %vm106 = vcmask 261120
    %v108 = vsel %vm106, %v82, 0
    %110 = vmatprep.subr.bf16.mxu0 0
    %111 = vmatpush1.bf16.msra.mxu0 0
    %112 = vmatprep.subr.bf16.mxu0 0
    %113 = vmatpush1.bf16.msra.mxu0 0
    %114 = vmatprep.subr.bf16.mxu0 0
    %115 = vmatpush1.bf16.msra.mxu0 0
    %116 = vmatprep.subr.bf16.mxu0 0
    %117 = vmatpush1.bf16.msra.mxu0 0
    %118 = vmatprep.subr.bf16.mxu0 0
    %119 = vmatpush1.bf16.msra.mxu0 0
    %120 = vmatprep.subr.bf16.mxu0 0
    %121 = vmatpush1.bf16.msra.mxu0 0
    %122 = vmatprep.subr.bf16.mxu0 0
    %123 = vmatpush1.bf16.msra.mxu0 %v103
    %124 = vmatprep.subr.bf16.mxu0 0
    %125 = vmatpush1.bf16.msra.mxu0 %v102
    %126 = vmatprep.subr.bf16.mxu0 0
    %127 = vmatpush2.bf16.msra.mxu0 0
    %128 = vmatprep.subr.bf16.mxu0 0
    %129 = vmatpush2.bf16.msra.mxu0 0
    %130 = vmatprep.subr.bf16.mxu0 0
    %131 = vmatpush2.bf16.msra.mxu0 0
    %132 = vmatprep.subr.bf16.mxu0 0
    %133 = vmatpush2.bf16.msra.mxu0 0
    %134 = vmatprep.subr.bf16.mxu0 0
    %135 = vmatpush2.bf16.msra.mxu0 0
    %136 = vmatprep.subr.bf16.mxu0 0
    %137 = vmatpush2.bf16.msra.mxu0 0
    %138 = vmatprep.subr.bf16.mxu0 0
    %139 = vmatpush2.bf16.msra.mxu0 0
    %140 = vmatprep.subr.bf16.mxu0 0
    %141 = vmatpush2.bf16.msra.mxu0 0
    %142 = vmatprep.mubr.bf16.mxu0 0
    %143 = vmatmul.mubr.bf16.gmra.mxu0 %v108
    %v144 = vpop.f32.mrf.mxu0
    %v145 = vadd.f32 %v92, %v144
    %v146 = vpop.f32.mrf.mxu0
    %v147 = vpop.f32.mrf.mxu0
    %v148 = vpop.f32.mrf.mxu0
    %149 = vdwg.mxu0
    %v150 = vmax.f32 %v145, 0.0
    %v151 = vld [vmem:[#allocation7] sm:$0xf]
    %v152 = vld [vmem:[#allocation7 + $0x4] sm:$0xf]
    %v153 = vld [vmem:[#allocation7 + $0x8] sm:$0xf]
    %v154 = vld [vmem:[#allocation7 + $0xc] sm:$0xf]
    %v155 = vld [vmem:[%s4] sm:$0x1]
    %v156 = vpack.c.bf16 %v150, %v150
    %v158 = vlaneseq
    %v159 = vshrl.u32 %v158, 7
    %v160 = vsub.s32 0, %v159
    %v161 = vrot.slane %v155, %v160
    %v167 = vunpack.c.l.b16 %v151
    %v168 = vunpack.c.l.b16 %v152
    %v169 = vunpack.c.l.b16 %v153
    %v170 = vunpack.c.l.b16 %v154
    %v171 = vpack.c.b16 %v168, %v167
    %v172 = vpack.c.b16 %v170, %v169
    %v176 = vsel %vm106, %v156, 0
    %178 = vmatprep.subr.bf16.mxu0 0
    %179 = vmatpush1.bf16.msra.mxu0 0
    %180 = vmatprep.subr.bf16.mxu0 0
    %181 = vmatpush1.bf16.msra.mxu0 0
    %182 = vmatprep.subr.bf16.mxu0 0
    %183 = vmatpush1.bf16.msra.mxu0 0
    %184 = vmatprep.subr.bf16.mxu0 0
    %185 = vmatpush1.bf16.msra.mxu0 0
    %186 = vmatprep.subr.bf16.mxu0 0
    %187 = vmatpush1.bf16.msra.mxu0 0
    %188 = vmatprep.subr.bf16.mxu0 0
    %189 = vmatpush1.bf16.msra.mxu0 0
    %190 = vmatprep.subr.bf16.mxu0 0
    %191 = vmatpush1.bf16.msra.mxu0 %v172
    %192 = vmatprep.subr.bf16.mxu0 0
    %193 = vmatpush1.bf16.msra.mxu0 %v171
    %194 = vmatprep.subr.bf16.mxu0 0
    %195 = vmatpush2.bf16.msra.mxu0 0
    %196 = vmatprep.subr.bf16.mxu0 0
    %197 = vmatpush2.bf16.msra.mxu0 0
    %198 = vmatprep.subr.bf16.mxu0 0
    %199 = vmatpush2.bf16.msra.mxu0 0
    %200 = vmatprep.subr.bf16.mxu0 0
    %201 = vmatpush2.bf16.msra.mxu0 0
    %202 = vmatprep.subr.bf16.mxu0 0
    %203 = vmatpush2.bf16.msra.mxu0 0
    %204 = vmatprep.subr.bf16.mxu0 0
    %205 = vmatpush2.bf16.msra.mxu0 0
    %206 = vmatprep.subr.bf16.mxu0 0
    %207 = vmatpush2.bf16.msra.mxu0 0
    %208 = vmatprep.subr.bf16.mxu0 0
    %209 = vmatpush2.bf16.msra.mxu0 0
    %210 = vmatprep.mubr.bf16.mxu0 0
    %211 = vmatmul.mubr.bf16.gmra.mxu0 %v176
    %v212 = vpop.f32.mrf.mxu0
    %v213 = vadd.f32 %v161, %v212
    %v214 = vpop.f32.mrf.mxu0
    %v215 = vpop.f32.mrf.mxu0
    %v216 = vpop.f32.mrf.mxu0
    %217 = vdwg.mxu0
    %v218 = vmax.f32 %v213, 0.0
    %s219 = scalar_lea.vmem [#allocation7], 16
    %v220 = vld [vmem:[%s219] sm:$0xf]
    %v221 = vld [vmem:[%s219 + $0x4] sm:$0xf]
    %v222 = vld [vmem:[%s219 + $0x8] sm:$0xf]
    %v223 = vld [vmem:[%s219 + $0xc] sm:$0xf]
    %s224 = scalar_lea.vmem %s4, 1
    %v225 = vld [vmem:[%s224] sm:$0x1]
    %v226 = vpack.c.bf16 %v218, %v218
    %v228 = vlaneseq
    %v229 = vshrl.u32 %v228, 7
    %v230 = vsub.s32 0, %v229
    %v231 = vrot.slane %v225, %v230
    %v237 = vunpack.c.l.b16 %v220
    %v238 = vunpack.c.l.b16 %v221
    %v239 = vunpack.c.l.b16 %v222
    %v240 = vunpack.c.l.b16 %v223
    %v241 = vpack.c.b16 %v238, %v237
    %v242 = vpack.c.b16 %v240, %v239
    %v246 = vsel %vm106, %v226, 0
    %248 = vmatprep.subr.bf16.mxu0 0
    %249 = vmatpush1.bf16.msra.mxu0 0
    %250 = vmatprep.subr.bf16.mxu0 0
    %251 = vmatpush1.bf16.msra.mxu0 0
    %252 = vmatprep.subr.bf16.mxu0 0
    %253 = vmatpush1.bf16.msra.mxu0 0
    %254 = vmatprep.subr.bf16.mxu0 0
    %255 = vmatpush1.bf16.msra.mxu0 0
    %256 = vmatprep.subr.bf16.mxu0 0
    %257 = vmatpush1.bf16.msra.mxu0 0
    %258 = vmatprep.subr.bf16.mxu0 0
    %259 = vmatpush1.bf16.msra.mxu0 0
    %260 = vmatprep.subr.bf16.mxu0 0
    %261 = vmatpush1.bf16.msra.mxu0 %v242
    %262 = vmatprep.subr.bf16.mxu0 0
    %263 = vmatpush1.bf16.msra.mxu0 %v241
    %264 = vmatprep.subr.bf16.mxu0 0
    %265 = vmatpush2.bf16.msra.mxu0 0
    %266 = vmatprep.subr.bf16.mxu0 0
    %267 = vmatpush2.bf16.msra.mxu0 0
    %268 = vmatprep.subr.bf16.mxu0 0
    %269 = vmatpush2.bf16.msra.mxu0 0
    %270 = vmatprep.subr.bf16.mxu0 0
    %271 = vmatpush2.bf16.msra.mxu0 0
    %272 = vmatprep.subr.bf16.mxu0 0
    %273 = vmatpush2.bf16.msra.mxu0 0
    %274 = vmatprep.subr.bf16.mxu0 0
    %275 = vmatpush2.bf16.msra.mxu0 0
    %276 = vmatprep.subr.bf16.mxu0 0
    %277 = vmatpush2.bf16.msra.mxu0 0
    %278 = vmatprep.subr.bf16.mxu0 0
    %279 = vmatpush2.bf16.msra.mxu0 0
    %280 = vmatprep.mubr.bf16.mxu0 0
    %281 = vmatmul.mubr.bf16.gmra.mxu0 %v246
    %v282 = vpop.f32.mrf.mxu0
    %v283 = vadd.f32 %v231, %v282
    %v284 = vpop.f32.mrf.mxu0
    %v285 = vpop.f32.mrf.mxu0
    %v286 = vpop.f32.mrf.mxu0
    %287 = vdwg.mxu0
    %v288 = vmax.f32 %v283, 0.0
    %v289 = vpack.c.bf16 %v288, %v288
    %v290 = vld [vmem:[#allocation8] sm:$0xf]
    %v291 = vld [vmem:[#allocation8 + $0x4] sm:$0xf]
    %v292 = vld [vmem:[#allocation8 + $0x8] sm:$0xf]
    %v293 = vld [vmem:[#allocation8 + $0xc] sm:$0xf]
    %v294 = vld [vmem:[%s6] sm:$0x1]
    %v296 = vlaneseq
    %v297 = vshrl.u32 %v296, 7
    %v298 = vsub.s32 0, %v297
    %v299 = vrot.slane %v294, %v298
    %v305 = vunpack.c.l.b16 %v290
    %v306 = vunpack.c.l.b16 %v291
    %v307 = vunpack.c.l.b16 %v292
    %v308 = vunpack.c.l.b16 %v293
    %v309 = vpack.c.b16 %v306, %v305
    %v310 = vpack.c.b16 %v308, %v307
    %v314 = vsel %vm106, %v289, 0
    %316 = vmatprep.subr.bf16.mxu0 0
    %317 = vmatpush1.bf16.msra.mxu0 0
    %318 = vmatprep.subr.bf16.mxu0 0
    %319 = vmatpush1.bf16.msra.mxu0 0
    %320 = vmatprep.subr.bf16.mxu0 0
    %321 = vmatpush1.bf16.msra.mxu0 0
    %322 = vmatprep.subr.bf16.mxu0 0
    %323 = vmatpush1.bf16.msra.mxu0 0
    %324 = vmatprep.subr.bf16.mxu0 0
    %325 = vmatpush1.bf16.msra.mxu0 0
    %326 = vmatprep.subr.bf16.mxu0 0
    %327 = vmatpush1.bf16.msra.mxu0 0
    %328 = vmatprep.subr.bf16.mxu0 0
    %329 = vmatpush1.bf16.msra.mxu0 %v310
    %330 = vmatprep.subr.bf16.mxu0 0
    %331 = vmatpush1.bf16.msra.mxu0 %v309
    %332 = vmatprep.subr.bf16.mxu0 0
    %333 = vmatpush2.bf16.msra.mxu0 0
    %334 = vmatprep.subr.bf16.mxu0 0
    %335 = vmatpush2.bf16.msra.mxu0 0
    %336 = vmatprep.subr.bf16.mxu0 0
    %337 = vmatpush2.bf16.msra.mxu0 0
    %338 = vmatprep.subr.bf16.mxu0 0
    %339 = vmatpush2.bf16.msra.mxu0 0
    %340 = vmatprep.subr.bf16.mxu0 0
    %341 = vmatpush2.bf16.msra.mxu0 0
    %342 = vmatprep.subr.bf16.mxu0 0
    %343 = vmatpush2.bf16.msra.mxu0 0
    %344 = vmatprep.subr.bf16.mxu0 0
    %345 = vmatpush2.bf16.msra.mxu0 0
    %346 = vmatprep.subr.bf16.mxu0 0
    %347 = vmatpush2.bf16.msra.mxu0 0
    %348 = vmatprep.mubr.bf16.mxu0 0
    %349 = vmatmul.mubr.bf16.gmra.mxu0 %v314
    %v350 = vpop.f32.mrf.mxu0
    %v351 = vadd.f32 %v299, %v350
    %v352 = vpop.f32.mrf.mxu0
    %v353 = vpop.f32.mrf.mxu0
    %v354 = vpop.f32.mrf.mxu0
    %355 = vdwg.mxu0
    %356 = vst [vmem:[#allocation10] sm:$0xff] %v351
    // Predicated region
    $region46: #{tpu_custom_call.1} parent=1 // pred_check
      _
    $region47: #{tpu_custom_call.1} parent=1 // pred_check_branch
      %358 = sbr.rel (0) target = $region49
    $region48: #{tpu_custom_call.1} parent=1 // pred_region
      %s360 = ssub.s32 128, 128
      %361 = vsyncadd [#allocation4], %s360
      %s363 = sshll.u32 [#allocation10], 4
      %s364 = int_to_ptr.vmem [resolvable:$true] %s363
      %366 = dma.vmem_to_hbm [thread:$0]  %s364, 128, %s7, [#allocation4]
    $region49: #{tpu_custom_call.1} parent=1 // pred_fallthru
      _
    // Predicated region
    $region50: #{tpu_custom_call.1} parent=1 // pred_check
      _
    $region51: #{tpu_custom_call.1} parent=1 // pred_check_branch
      %368 = sbr.rel (0) target = $region53
    $region52: #{tpu_custom_call.1} parent=1 // pred_region
      %369 = dma.done [#allocation4], 128
    $region53: #{tpu_custom_call.1} parent=1 // pred_fallthru
      _
    %370 = vsyncpa [#allocation3], 1
    %371 = vsyncpa [#allocation6], 1
    %372 = vsyncpa [#allocation9], 1
    %373 = vsyncpa [#allocation4], 1

</llo_original>
